<compile_context>
chip_gen: v6e
topology: v6e:2x2x1
jax: 0.10.0
libtpu: 0.0.40
codegen_flags: <defaults>
</compile_context>

<pallas_src>
import functools

import jax
import jax.numpy as jnp
from jax.experimental import pallas as pl
from jax.experimental.pallas import tpu as pltpu


def _round_up(n: int, m: int) -> int:
    return ((n + m - 1) // m) * m


# ----------------------------------------------------------------------------
# Pallas kernel: mean over axis=1 of a (B, T, D) array -> (B, D)
# Grid = (b_tiles, d_tiles, t_tiles); T is the reduction axis (last, "arbitrary").
# ----------------------------------------------------------------------------
def _mean_axis1_kernel(x_ref, o_ref, acc_ref, *, inv_t, t_total, block_t, ragged_t):
    t = pl.program_id(2)

    @pl.when(t == 0)
    def _init():
        acc_ref[...] = jnp.zeros_like(acc_ref)

    x = x_ref[...].astype(jnp.float32)
    if ragged_t:
        # Zero the invalid tail of the (only) ragged T block.  For non-last blocks
        # `rem >= block_t`, so the mask is all-true (cheap; kernel is mem-bound).
        rem = t_total - t * block_t
        idx = jax.lax.broadcasted_iota(jnp.int32, x.shape, 1)
        x = jnp.where(idx < rem, x, 0.0)

    # Partial sum of this T-block, accumulated in an f32 resident scratch tile.
    acc_ref[...] += jnp.sum(x, axis=1)

    @pl.when(t == pl.num_programs(2) - 1)
    def _finalize():
        # Scale by 1/T (true T) and cast exactly once, on the last reduction step.
        o_ref[...] = (acc_ref[...] * inv_t).astype(o_ref.dtype)


def pallas_mean_over_tokens(x: jax.Array, *, block_t: int | None = None) -> jax.Array:
    """x: (B, T, D) -> (B, D), equivalent to torch `x.mean(dim=1)` (float output)."""
    B, T, D = x.shape
    itemsize = jnp.dtype(x.dtype).itemsize
    # PyTorch's mean errors on integer tensors; emit a float result instead of
    # silently truncating back to an integer dtype.
    out_dtype = x.dtype if jnp.issubdtype(x.dtype, jnp.floating) else jnp.float32

    # Sublane packing for the second-to-last block dim: 8 (f32) / 16 (bf16) / 32 (int8).
    sub = max(8, 32 // max(itemsize, 1))

    # --- batch blocking -------------------------------------------------------
    # Full extent for small B, otherwise 8-row tiles.  A ragged last B tile is
    # fine: OOB input rows only feed OOB output rows, which Pallas discards.
    BB = B if B <= 8 else 8
    nb = pl.cdiv(B, BB)

    # --- D blocking -----------------------------------------------------------
    # Default: full extent (bypasses the 128-lane rule, no padding, unmasked
    # lane-dense stores).  If there is only one batch tile and D is wide, split D
    # into 128-aligned chunks so both v7x TensorCores get a "parallel" tile.
    if nb == 1 and D >= 256:
        BD = min(_round_up(pl.cdiv(D, 2), 128), 1024)
    else:
        BD = D
    nd = pl.cdiv(D, BD)

    # --- T blocking -----------------------------------------------------------
    # VMEM budget per step: 2 double-buffered input blocks + (for sub-f32 dtypes)
    # one f32 upcast temporary.  ~36 MiB for blocks + 48 MiB scoped limit is safe
    # on v5e/v6e (128 MiB physical) and v7x (64 MiB physical per TC).
    block_budget = 36 * 1024 * 1024
    per_t_row = BB * BD * (2 * itemsize + (4 if itemsize < 4 else 0))
    bt_cap = max(sub, block_budget // max(per_t_row, 1))

    BT = min(bt_cap, T if block_t is None else block_t)
    if BT >= T:
        BT = T                                 # full extent — always legal
    else:
        BT = max(sub, (BT // sub) * sub)       # keep the sublane dim aligned
    nt = pl.cdiv(T, BT)
    ragged_t = (T % BT) != 0

    grid = (nb, nd, nt)

    kernel = functools.partial(
        _mean_axis1_kernel,
        inv_t=1.0 / T,
        t_total=T,
        block_t=BT,
        ragged_t=ragged_t,
    )

    return pl.pallas_call(
        kernel,
        out_shape=jax.ShapeDtypeStruct((B, D), out_dtype),
        grid_spec=pltpu.PrefetchScalarGridSpec(
            num_scalar_prefetch=0,
            grid=grid,
            in_specs=[pl.BlockSpec((BB, BT, BD), lambda b, d, t: (b, t, d))],
            # Same output block across the T axis -> resident output tile.
            out_specs=pl.BlockSpec((BB, BD), lambda b, d, t: (b, d)),
            scratch_shapes=[pltpu.VMEM((BB, BD), jnp.float32)],
        ),
        compiler_params=pltpu.CompilerParams(
            dimension_semantics=("parallel", "parallel", "arbitrary"),
            vmem_limit_bytes=48 * 1024 * 1024,
        ),
        cost_estimate=pl.CostEstimate(
            flops=B * T * D,
            transcendentals=0,
            bytes_accessed=B * T * D * itemsize + B * D * jnp.dtype(out_dtype).itemsize,
        ),
    )(x)


# ----------------------------------------------------------------------------
# LambdaLayer — faithful port of the PyTorch module (no params, no state).
# ----------------------------------------------------------------------------
class LambdaLayer:
    """Wraps an arbitrary callable as a layer object (JAX port)."""

    def __init__(self, func, **kwargs):
        self.func = func
        self._init_model()
        self._init_weight()

    def _init_model(self):
        pass  # no architecture

    def _init_weight(self):
        pass  # no weights

    def __call__(self, *args, **kwargs):
        return self.forward(*args, **kwargs)

    def forward(self, *args, **kwargs):
        return self.func(*args, **kwargs)


# TODO(synk): the wrapped `func` is user-supplied at construction time; only the
# concrete instance used here (token-mean pooling) is lowered to a Pallas kernel.

if __name__ == "__main__":
    key = jax.random.PRNGKey(0)

    # --- primary check: small shapes consistent with the module -----------------
    B, T, D = 2, 8, 32
    x = jax.random.normal(key, (B, T, D), dtype=jnp.float32)

    layer = LambdaLayer(pallas_mean_over_tokens)
    out = jax.block_until_ready(layer(x))
    ref = jnp.mean(x, axis=1)
    assert out.shape == (B, D), out.shape
    assert jnp.allclose(out, ref, atol=1e-5, rtol=1e-5), "mismatch (f32 basic)"

    # --- bf16, non-128 D, multi-step reduction with ragged last T block --------
    k2 = jax.random.fold_in(key, 1)
    x2 = jax.random.normal(k2, (4, 50, 200), dtype=jnp.bfloat16)
    layer2 = LambdaLayer(functools.partial(pallas_mean_over_tokens, block_t=16))
    out2 = jax.block_until_ready(layer2(x2))
    ref2 = jnp.mean(x2.astype(jnp.float32), axis=1)
    assert out2.shape == (4, 200), out2.shape
    assert jnp.allclose(out2.astype(jnp.float32), ref2, atol=2e-2, rtol=2e-2), \
        "mismatch (bf16 ragged-T)"

    # --- single batch tile, wide D -> D split across a parallel grid axis ------
    k3 = jax.random.fold_in(key, 2)
    x3 = jax.random.normal(k3, (3, 16, 384), dtype=jnp.float32)
    out3 = jax.block_until_ready(layer(x3))
    ref3 = jnp.mean(x3, axis=1)
    assert out3.shape == (3, 384), out3.shape
    assert jnp.allclose(out3, ref3, atol=1e-5, rtol=1e-5), "mismatch (D-split)"

    # --- ragged last batch tile (B > 8, not a multiple of 8) -------------------
    k4 = jax.random.fold_in(key, 3)
    x4 = jax.random.normal(k4, (10, 12, 128), dtype=jnp.float32)
    out4 = jax.block_until_ready(layer(x4))
    ref4 = jnp.mean(x4, axis=1)
    assert out4.shape == (10, 128), out4.shape
    assert jnp.allclose(out4, ref4, atol=1e-5, rtol=1e-5), "mismatch (ragged B)"

    print("KERNEL_OK")
</pallas_src>

<mosaic_0001>
module attributes {stable_mosaic.version = 11 : i64} {
  func.func @_mean_axis1_kernel(%arg0: i32, %arg1: i32, %arg2: i32, %arg3: memref<2x8x32xf32, #tpu.memory_space<vmem>>, %arg4: memref<2x32xf32, #tpu.memory_space<vmem>>, %arg5: memref<2x32xf32, #tpu.memory_space<vmem>>) attributes {dimension_semantics = [#tpu.dimension_semantics<parallel>, #tpu.dimension_semantics<parallel>, #tpu.dimension_semantics<arbitrary>], iteration_bounds = array<i64: 1, 1, 1>, scalar_prefetch = 0 : i64, scratch_operands = 1 : i64, tpu.core_type = #tpu.core_type<tc>, window_params = [{transform_indices = @transform_0, window_bounds = array<i64: 2, 8, 32>}, {transform_indices = @transform_1, window_bounds = array<i64: 2, 32>}]} {
    %c0_i32 = arith.constant 0 : i32
    %0 = arith.cmpi eq, %arg2, %c0_i32 : i32
    %1 = arith.extui %0 : i1 to i32
    %c0_i32_0 = arith.constant 0 : i32
    %2 = arith.cmpi ne, %1, %c0_i32_0 : i32
    scf.if %2 {
      %cst_9 = arith.constant 0.000000e+00 : f32
      %11 = vector.broadcast %cst_9 : f32 to vector<2x32xf32>
      %c0_10 = arith.constant 0 : index
      %c0_11 = arith.constant 0 : index
      %12 = vector.load %arg5[%c0_10, %c0_11] : memref<2x32xf32, #tpu.memory_space<vmem>>, vector<2x32xf32>
      tpu.vector_store %arg5[%c0_10, %c0_11], %11 {strides = array<i32>} : memref<2x32xf32, #tpu.memory_space<vmem>>, vector<2x32xf32>,
    } else {
    }
    %c0 = arith.constant 0 : index
    %c0_1 = arith.constant 0 : index
    %c0_2 = arith.constant 0 : index
    %3 = vector.load %arg3[%c0, %c0_1, %c0_2] : memref<2x8x32xf32, #tpu.memory_space<vmem>>, vector<2x8x32xf32>
    %c0_3 = arith.constant 0 : index
    %c0_4 = arith.constant 0 : index
    %4 = vector.load %arg5[%c0_3, %c0_4] : memref<2x32xf32, #tpu.memory_space<vmem>>, vector<2x32xf32>
    %cst = arith.constant dense<0.000000e+00> : vector<2x32xf32>
    %5 = vector.multi_reduction <add>, %3, %cst [1] : vector<2x8x32xf32> to vector<2x32xf32>
    %6 = arith.addf %4, %5 : vector<2x32xf32>
    %c0_5 = arith.constant 0 : index
    %c0_6 = arith.constant 0 : index
    %7 = vector.load %arg5[%c0_5, %c0_6] : memref<2x32xf32, #tpu.memory_space<vmem>>, vector<2x32xf32>
    tpu.vector_store %arg5[%c0_5, %c0_6], %6 {strides = array<i32>} : memref<2x32xf32, #tpu.memory_space<vmem>>, vector<2x32xf32>,
    %c0_i32_7 = arith.constant 0 : i32
    %8 = arith.cmpi eq, %arg2, %c0_i32_7 : i32
    %9 = arith.extui %8 : i1 to i32
    %c0_i32_8 = arith.constant 0 : i32
    %10 = arith.cmpi ne, %9, %c0_i32_8 : i32
    scf.if %10 {
      %c0_9 = arith.constant 0 : index
      %c0_10 = arith.constant 0 : index
      %11 = vector.load %arg5[%c0_9, %c0_10] : memref<2x32xf32, #tpu.memory_space<vmem>>, vector<2x32xf32>
      %cst_11 = arith.constant 1.250000e-01 : f32
      %12 = vector.broadcast %cst_11 : f32 to vector<2x32xf32>
      %13 = arith.mulf %11, %12 : vector<2x32xf32>
      %c0_12 = arith.constant 0 : index
      %c0_13 = arith.constant 0 : index
      %14 = vector.load %arg4[%c0_12, %c0_13] : memref<2x32xf32, #tpu.memory_space<vmem>>, vector<2x32xf32>
      tpu.vector_store %arg4[%c0_12, %c0_13], %13 {strides = array<i32>} : memref<2x32xf32, #tpu.memory_space<vmem>>, vector<2x32xf32>,
    } else {
    }
    return
  }
  func.func @transform_0(%arg0: i32, %arg1: i32, %arg2: i32) -> (i32, i32, i32) {
    %c0_i32 = arith.constant 0 : i32
    return %arg0, %arg2, %arg1 : i32, i32, i32
  }
  func.func @transform_1(%arg0: i32, %arg1: i32, %arg2: i32) -> (i32, i32) {
    %c0_i32 = arith.constant 0 : i32
    return %arg0, %arg1 : i32, i32
  }
}

</mosaic_0001>

<llo_original>
// kernel: tpu_custom_call.1
$region0: #{tpu_custom_call.1}
  #allocation0 [shape = 'u32[]', space=smem, size = 0x4, offset = 0x4, fixed_abs, tag = 'smem constant byte address 0x4 - core index']
  #allocation1 [shape = 'u32[144,128]{1,0:T(1,128)}', space=vmem, size = 0x12000, scoped, tag = 'internal scratch']
  #allocation2 [shape = 'f32[2,32]{1,0:T(2,128)}', space=vmem, size = 0x400, scoped, tag = 'scratch operand']
  %s0 = inlined_call_operand.hbm [shape: f32[2,8,32], index: 0, kind: input, shape index: {}]
  %s1 = inlined_call_operand.hbm [shape: f32[2,32], index: 1, kind: output, shape index: {}]
  %s2 = sld [smem:[#allocation0]]
  $region26: #{tpu_custom_call.1} parent=0
    _
  %s4 = ssub.s32 1, %s2
  %s5 = scalar_select 0, %s4, %s2
  $region1: #{tpu_custom_call.1} parent=0
    #allocation3 [shape = 'u8[8192]{0}', space=vmem, size = 0x2000, scoped, tag = 'input window, operand 0, single buffered']
    #allocation4 [shape = 's32[1]{0}', space=sflag, size = 0x4, scoped, tag = 'scoped memory for tpu_custom_call.1']
    #allocation5 [shape = 's32[1]{0}', space=sflag, size = 0x4, scoped, tag = 'scoped memory for tpu_custom_call.1']
    #allocation6 [shape = 'u8[1024]{0}', space=vmem, size = 0x400, scoped, tag = 'output window, operand 0, single buffered']
    %6 = vsyncpa [#allocation4], 0
    %7 = vsyncpa [#allocation5], 0
    // Predicated region
    $region2: #{tpu_custom_call.1} parent=1 // pred_check
      _
    $region3: #{tpu_custom_call.1} parent=1 // pred_check_branch
      %9 = sbr.rel (0) target = $region5
    $region4: #{tpu_custom_call.1} parent=1 // pred_region
      %s11 = ssub.s32 256, 256
      %12 = vsyncadd [#allocation4], %s11
      %s13 = sshll.u32 [#allocation3], 4
      %s14 = int_to_ptr.vmem [resolvable:$true] %s13
      %19 = dma.hbm_to_vmem [thread:$0]  %s0, 256, %s14, [#allocation4], 128, 128, 8
    $region5: #{tpu_custom_call.1} parent=1 // pred_fallthru
      _
    // Predicated region
    $region6: #{tpu_custom_call.1} parent=1 // pred_check
      _
    $region7: #{tpu_custom_call.1} parent=1 // pred_check_branch
      %21 = sbr.rel (0) target = $region9
    $region8: #{tpu_custom_call.1} parent=1 // pred_region
      %22 = dma.done [#allocation4], 256
    $region9: #{tpu_custom_call.1} parent=1 // pred_fallthru
      _
    %p23 = scmp.eq.s32.totalorder 0, 0
    // Predicated region
    $region10: #{tpu_custom_call.1} parent=1 // pred_check
      %p24 = pneg %p23
    $region11: #{tpu_custom_call.1} parent=1 // pred_check_branch
      %26 = sbr.rel (%p24) target = $region13
    $region12: #{tpu_custom_call.1} parent=1 // pred_region
      %vm27 = vcmask 254976
      %28 = vst.msk [vmem:[#allocation2] sm:$0x3] %vm27, 0.0
    $region13: #{tpu_custom_call.1} parent=1 // pred_fallthru
      _
    %v29 = vld [vmem:[#allocation3] sm:$0xff]
    %v30 = vld [vmem:[#allocation3 + $0x8] sm:$0xff]
    %v31 = vld [vmem:[#allocation2] sm:$0x3]
    %vm32 = vcmask 261120
    %v33 = vsel %vm32, %v29, 0.0
    %v34 = vrot.slane %v33, 4
    %v35 = vadd.f32 %v33, %v34
    %v36 = vrot.slane %v35, 2
    %v37 = vadd.f32 %v35, %v36
    %v38 = vrot.slane %v37, 1
    %v39 = vadd.f32 %v37, %v38
    %v40 = vsel %vm32, %v30, 0.0
    %v41 = vrot.slane %v40, 4
    %v42 = vadd.f32 %v40, %v41
    %v43 = vrot.slane %v42, 2
    %v44 = vadd.f32 %v42, %v43
    %v45 = vrot.slane %v44, 1
    %v46 = vadd.f32 %v44, %v45
    %vm49 = vcmask 1041409
    %v50 = vsel %vm49, %v46, %v39
    %v52 = vadd.f32 %v31, %v50
    %vm53 = vcmask 254976
    %54 = vst.msk [vmem:[#allocation2] sm:$0x3] %vm53, %v52
    // Predicated region
    $region14: #{tpu_custom_call.1} parent=1 // pred_check
      %p55 = pneg %p23
    $region15: #{tpu_custom_call.1} parent=1 // pred_check_branch
      %57 = sbr.rel (%p55) target = $region17
    $region16: #{tpu_custom_call.1} parent=1 // pred_region
      %v58 = vld [vmem:[#allocation2] sm:$0x3]
      %v59 = vmul.f32 %v58, 0.125
      %60 = vst.msk [vmem:[#allocation6] sm:$0x3] %vm53, %v59
    $region17: #{tpu_custom_call.1} parent=1 // pred_fallthru
      _
    // Predicated region
    $region18: #{tpu_custom_call.1} parent=1 // pred_check
      _
    $region19: #{tpu_custom_call.1} parent=1 // pred_check_branch
      %62 = sbr.rel (0) target = $region21
    $region20: #{tpu_custom_call.1} parent=1 // pred_region
      %s64 = ssub.s32 32, 32
      %65 = vsyncadd [#allocation5], %s64
      %s67 = sshll.u32 [#allocation6], 4
      %s68 = int_to_ptr.vmem [resolvable:$true] %s67
      %70 = dma.vmem_to_hbm [thread:$0]  %s68, 32, %s1, [#allocation5]
    $region21: #{tpu_custom_call.1} parent=1 // pred_fallthru
      _
    // Predicated region
    $region22: #{tpu_custom_call.1} parent=1 // pred_check
      _
    $region23: #{tpu_custom_call.1} parent=1 // pred_check_branch
      %72 = sbr.rel (0) target = $region25
    $region24: #{tpu_custom_call.1} parent=1 // pred_region
      %73 = dma.done [#allocation5], 32
    $region25: #{tpu_custom_call.1} parent=1 // pred_fallthru
      _
    %74 = vsyncpa [#allocation4], 1
    %75 = vsyncpa [#allocation5], 1

</llo_original>
